<compile_context>
chip_gen: v7x
topology: tpu7x:2x2x1
jax: 0.10.0
libtpu: 0.0.40
codegen_flags: <defaults>
</compile_context>

<pallas_src>
import functools

import jax
import jax.numpy as jnp
from jax.experimental import pallas as pl
from jax.experimental.pallas import tpu as pltpu


def _round_up(n, m):
    return ((n + m - 1) // m) * m


def _divisors(dim, mult, cap):
    """Multiples of `mult` dividing `dim`, descending, capped at `cap`."""
    out = [d for d in range(mult, min(dim, cap) + 1, mult) if dim % d == 0]
    return sorted(out, reverse=True) or [dim]


# ----------------------------------------------------------------------------
# Kernels
# ----------------------------------------------------------------------------
def _resid_kernel_resident(x_ref, w_ref, b_ref, o_ref):
    # Whole (N_p, N_p) weight resident in VMEM (DMA'd once across the grid).
    x = x_ref[...]                                            # (tile_b, N_p)
    y = jnp.dot(x.astype(jnp.bfloat16), w_ref[...],           # MXU, bf16 in / f32 acc
                preferred_element_type=jnp.float32)
    y = y + b_ref[...] + x.astype(jnp.float32)                # bias + residual (VPU)
    o_ref[...] = jnp.tanh(y).astype(o_ref.dtype)              # EUP tanh, cast on store


def _resid_kernel_streamed(x_ref, w_ref, b_ref, o_ref, xb_ref, *, tile_n):
    # Weight streamed as (N_p, tile_n) column blocks; x row block resident over j.
    j = pl.program_id(1)

    @pl.when(j == 0)
    def _():
        # Hoisted bf16 cast: once per batch tile, reused for every j step.
        xb_ref[...] = x_ref[...].astype(jnp.bfloat16)

    y = jnp.dot(xb_ref[...], w_ref[...], preferred_element_type=jnp.float32)
    off = pl.multiple_of(j * tile_n, 128)                     # 128-aligned lane slice
    x_res = x_ref[:, pl.ds(off, tile_n)].astype(jnp.float32)  # residual columns
    y = y + b_ref[...] + x_res
    o_ref[...] = jnp.tanh(y).astype(o_ref.dtype)


# ----------------------------------------------------------------------------
# Parameter prep (one-time, outside the hot path)
# ----------------------------------------------------------------------------
def prepare_resid_linear_params(weight, bias):
    """Transpose W once to (n_in, n_out) (native MXU layout), pad both to a
    lane-dense multiple of 128, and cast the weight to bf16."""
    n_out, n_in = weight.shape
    assert n_in == n_out, "ResidLinear requires n_in == n_out"
    n_p = _round_up(n_out, 128)
    w_t = jnp.transpose(weight).astype(jnp.bfloat16)          # (n_in, n_out)
    w_p = jnp.zeros((n_p, n_p), jnp.bfloat16).at[:n_in, :n_out].set(w_t)
    b_p = jnp.zeros((1, n_p), jnp.float32).at[0, :n_out].set(bias.astype(jnp.float32))
    return w_p, b_p


# ----------------------------------------------------------------------------
# Wrapper
# ----------------------------------------------------------------------------
def resid_linear(x, w_padded, b_padded, *, weight_resident=None,
                 tile_b=None, tile_n=None):
    """x: (B, N); w_padded: (N_p, N_p) bf16, padded transposed weight (n_in, n_out);
    b_padded: (1, N_p) f32. Returns tanh(x @ W^T + b + x), shape (B, N)."""
    B, N = x.shape
    N_p = w_padded.shape[0]
    assert w_padded.shape == (N_p, N_p) and b_padded.shape == (1, N_p)
    assert N <= N_p and N_p % 128 == 0

    x_itm = x.dtype.itemsize
    o_itm = x_itm                       # output keeps the input dtype
    # TODO(synk): optionally emit bf16 output (halves write traffic) if the consumer accepts it.

    # --- generation-aware VMEM budget ----------------------------------------
    try:
        vmem_cap = int(pltpu.get_tpu_info().vmem_capacity_bytes)
    except Exception:
        vmem_cap = 64 << 20             # conservative fallback (v7x per-TensorCore)
    budget = (vmem_cap * 3) // 4        # headroom for Mosaic internal scratch

    # --- batch padding: full MXU rows for large B, no awkward tiny tiles ------
    MXU_M = 256
    B_p = _round_up(B, 8) if B <= MXU_M else _round_up(B, MXU_M)

    # --- weight residency decision --------------------------------------------
    w_full_db = 2 * N_p * N_p * 2       # double-buffered bf16 full weight
    if weight_resident is None:
        weight_resident = w_full_db <= budget // 2

    x_p = x
    if (B_p, N_p) != (B, N):
        x_p = jnp.pad(x, ((0, B_p - B), (0, N_p - N)))

    if weight_resident:
        # ---- path A: full weight DMA'd once; 1-D grid over batch row tiles ---
        fixed = w_full_db + 2 * N_p * 4                       # weight + bias
        per_row = 2 * N_p * x_itm + 2 * N_p * o_itm           # x block + out block
        max_rows = max((budget - fixed) // per_row, 8)
        if tile_b is None:
            cands = _divisors(B_p, 8, 1024)
            tile_b = next((d for d in cands if d <= max_rows), cands[-1])
        assert tile_b % 8 == 0 and B_p % tile_b == 0
        grid = (B_p // tile_b,)
        vmem_need = fixed + tile_b * per_row
        kernel = _resid_kernel_resident
        in_specs = [
            pl.BlockSpec((tile_b, N_p), lambda i: (i, 0)),
            pl.BlockSpec((N_p, N_p), lambda i: (0, 0)),       # constant block: fetched once
            pl.BlockSpec((1, N_p), lambda i: (0, 0)),
        ]
        out_specs = pl.BlockSpec((tile_b, N_p), lambda i: (i, 0))   # lane-dense out
        scratch_shapes = []
        dim_sem = ("parallel",)
    else:
        # ---- path B: weight streamed in (N_p, tile_n) column blocks ----------
        if tile_b is None or tile_n is None:
            tn_cands = _divisors(N_p, 128, 512)
            tb_cands = _divisors(B_p, 8, 1024)
            sel = None
            for tb in tb_cands:
                for tn in tn_cands:
                    need = (2 * tb * N_p * x_itm              # x row block (resident over j)
                            + tb * N_p * 2                    # hoisted bf16 x scratch
                            + 2 * N_p * tn * 2                # bf16 weight column block
                            + 2 * tn * 4                      # bias block
                            + 2 * tb * tn * o_itm)            # output block
                    if need <= budget:
                        sel = (tb, tn)
                        break
                if sel is not None:
                    break
            if sel is None:
                sel = (tb_cands[-1], tn_cands[-1])
            tile_b = tile_b or sel[0]
            tile_n = tile_n or sel[1]
        assert tile_b % 8 == 0 and B_p % tile_b == 0
        assert tile_n % 128 == 0 and N_p % tile_n == 0
        grid = (B_p // tile_b, N_p // tile_n)
        vmem_need = (2 * tile_b * N_p * x_itm + tile_b * N_p * 2
                     + 2 * N_p * tile_n * 2 + 2 * tile_n * 4
                     + 2 * tile_b * tile_n * o_itm)
        kernel = functools.partial(_resid_kernel_streamed, tile_n=tile_n)
        in_specs = [
            pl.BlockSpec((tile_b, N_p), lambda i, j: (i, 0)),   # resident across j
            pl.BlockSpec((N_p, tile_n), lambda i, j: (0, j)),   # streamed weight cols
            pl.BlockSpec((1, tile_n), lambda i, j: (0, j)),
        ]
        out_specs = pl.BlockSpec((tile_b, tile_n), lambda i, j: (i, j))  # lane-dense
        scratch_shapes = [pltpu.VMEM((tile_b, N_p), jnp.bfloat16)]
        # j is "arbitrary" so the per-batch-tile scratch init (j == 0) is valid
        # under megacore sharding; i is the sharded/parallel axis.
        dim_sem = ("parallel", "arbitrary")

    vmem_limit = int(min(max(2 * vmem_need + (4 << 20), 32 << 20),
                         (vmem_cap * 9) // 10))

    out_p = pl.pallas_call(
        kernel,
        out_shape=jax.ShapeDtypeStruct((B_p, N_p), x.dtype),
        grid_spec=pltpu.PrefetchScalarGridSpec(
            num_scalar_prefetch=0,
            grid=grid,
            in_specs=in_specs,
            out_specs=out_specs,
            scratch_shapes=scratch_shapes,
        ),
        compiler_params=pltpu.CompilerParams(
            dimension_semantics=dim_sem,
            vmem_limit_bytes=vmem_limit,
        ),
    )(x_p, w_padded, b_padded)

    # NOTE: for N_p so large that a (tile_b, N_p) x row block itself no longer
    # fits VMEM, add a third "arbitrary" K grid axis with an f32 accumulator
    # scratch and move bias/residual/tanh under pl.when(k == num_programs(2)-1).

    if (B_p, N_p) != (B, N):
        out_p = out_p[:B, :N]
    return out_p


def resid_linear_ref(x, weight, bias):
    return jnp.tanh(x @ weight.T + bias + x)


if __name__ == "__main__":
    key = jax.random.PRNGKey(0)
    k_x, k_w, k_b, k2_x, k2_w, k2_b = jax.random.split(key, 6)

    # --- Test 1: small module shapes (batch=8, n_in=n_out=32), resident-weight path.
    B, N = 8, 32
    bound = 1.0 / (N ** 0.5)
    weight = jax.random.uniform(k_w, (N, N), jnp.float32, -bound, bound)   # (n_out, n_in)
    bias = jax.random.uniform(k_b, (N,), jnp.float32, -bound, bound)
    x = jax.random.normal(k_x, (B, N), jnp.float32)

    w_p, b_p = prepare_resid_linear_params(weight, bias)
    out = jax.block_until_ready(resid_linear(x, w_p, b_p))
    ref = resid_linear_ref(x, weight, bias)
    assert out.shape == (B, N)
    # bf16 MXU inputs with f32 accumulation -> looser tolerance than pure f32.
    assert jnp.allclose(out, ref, atol=5e-2, rtol=5e-2), "mismatch (resident path)"

    # --- Test 2: exercise the streamed-weight path (tiled output features).
    B2, N2 = 16, 256
    bound2 = 1.0 / (N2 ** 0.5)
    weight2 = jax.random.uniform(k2_w, (N2, N2), jnp.float32, -bound2, bound2)
    bias2 = jax.random.uniform(k2_b, (N2,), jnp.float32, -bound2, bound2)
    x2 = jax.random.normal(k2_x, (B2, N2), jnp.float32)

    w2_p, b2_p = prepare_resid_linear_params(weight2, bias2)
    out2 = jax.block_until_ready(
        resid_linear(x2, w2_p, b2_p, weight_resident=False, tile_n=128))
    ref2 = resid_linear_ref(x2, weight2, bias2)
    assert out2.shape == (B2, N2)
    assert jnp.allclose(out2, ref2, atol=5e-2, rtol=5e-2), "mismatch (streamed path)"

    print("KERNEL_OK")
</pallas_src>

<mosaic_0001>
module attributes {stable_mosaic.version = 11 : i64} {
  func.func @_resid_kernel_resident(%arg0: i32, %arg1: memref<8x128xf32, #tpu.memory_space<vmem>>, %arg2: memref<128x128xbf16, #tpu.memory_space<vmem>>, %arg3: memref<1x128xf32, #tpu.memory_space<vmem>>, %arg4: memref<8x128xf32, #tpu.memory_space<vmem>>) attributes {dimension_semantics = [#tpu.dimension_semantics<parallel>], iteration_bounds = array<i64: 1>, scalar_prefetch = 0 : i64, scratch_operands = 0 : i64, tpu.core_type = #tpu.core_type<tc>, window_params = [{transform_indices = @transform_0, window_bounds = array<i64: 8, 128>}, {pipeline_mode = #tpu.pipeline_mode<synchronous>, transform_indices = @transform_1, window_bounds = array<i64: 128, 128>}, {pipeline_mode = #tpu.pipeline_mode<synchronous>, transform_indices = @transform_2, window_bounds = array<i64: 1, 128>}, {transform_indices = @transform_3, window_bounds = array<i64: 8, 128>}]} {
    %c0 = arith.constant 0 : index
    %c0_0 = arith.constant 0 : index
    %0 = vector.load %arg1[%c0, %c0_0] : memref<8x128xf32, #tpu.memory_space<vmem>>, vector<8x128xf32>
    %1 = arith.truncf %0 : vector<8x128xf32> to vector<8x128xbf16>
    %c0_1 = arith.constant 0 : index
    %c0_2 = arith.constant 0 : index
    %2 = vector.load %arg2[%c0_1, %c0_2] : memref<128x128xbf16, #tpu.memory_space<vmem>>, vector<128x128xbf16>
    %cst = arith.constant dense<0.000000e+00> : vector<8x128xf32>
    %3 = tpu.matmul %1, %2, %cst {dimension_numbers = #tpu.dot_dimension_numbers<[1], [0], [0], [1], [0, 0, 1, 1], [], []>} : vector<8x128xbf16>, vector<128x128xbf16>, vector<8x128xf32> -> vector<8x128xf32>
    %c0_3 = arith.constant 0 : index
    %c0_4 = arith.constant 0 : index
    %4 = vector.load %arg3[%c0_3, %c0_4] : memref<1x128xf32, #tpu.memory_space<vmem>>, vector<1x128xf32>
    %5 = vector.broadcast %4 : vector<1x128xf32> to vector<8x128xf32>
    %6 = arith.addf %3, %5 : vector<8x128xf32>
    %7 = arith.addf %6, %0 : vector<8x128xf32>
    %8 = math.tanh %7 : vector<8x128xf32>
    %c0_5 = arith.constant 0 : index
    %c0_6 = arith.constant 0 : index
    %9 = vector.load %arg4[%c0_5, %c0_6] : memref<8x128xf32, #tpu.memory_space<vmem>>, vector<8x128xf32>
    tpu.vector_store %arg4[%c0_5, %c0_6], %8 {strides = array<i32>} : memref<8x128xf32, #tpu.memory_space<vmem>>, vector<8x128xf32>,
    return
  }
  func.func @transform_0(%arg0: i32) -> (i32, i32) {
    %c0_i32 = arith.constant 0 : i32
    %c0_i32_0 = arith.constant 0 : i32
    return %arg0, %c0_i32 : i32, i32
  }
  func.func @transform_1(%arg0: i32) -> (i32, i32) {
    %c0_i32 = arith.constant 0 : i32
    %c0_i32_0 = arith.constant 0 : i32
    %c0_i32_1 = arith.constant 0 : i32
    return %c0_i32, %c0_i32_0 : i32, i32
  }
  func.func @transform_2(%arg0: i32) -> (i32, i32) {
    %c0_i32 = arith.constant 0 : i32
    %c0_i32_0 = arith.constant 0 : i32
    %c0_i32_1 = arith.constant 0 : i32
    return %c0_i32, %c0_i32_0 : i32, i32
  }
  func.func @transform_3(%arg0: i32) -> (i32, i32) {
    %c0_i32 = arith.constant 0 : i32
    %c0_i32_0 = arith.constant 0 : i32
    return %arg0, %c0_i32 : i32, i32
  }
}

</mosaic_0001>

<llo_original>
// kernel: tpu_custom_call.1
$region0: #{tpu_custom_call.1}
  #allocation0 [shape = 'u32[]', space=smem, size = 0x4, offset = 0x4, fixed_abs, tag = 'smem constant byte address 0x4 - core index']
  #allocation1 [shape = 'u32[144,128]{1,0:T(1,128)}', space=vmem, size = 0x12000, scoped, tag = 'internal scratch']
  %s0 = inlined_call_operand.hbm [shape: f32[8,128], index: 0, kind: input, shape index: {}]
  %s1 = inlined_call_operand.hbm [shape: bf16[128,128], index: 1, kind: input, shape index: {}]
  %s2 = inlined_call_operand.vmem [shape: f32[1,128], index: 2, kind: input, shape index: {}]
  %s3 = inlined_call_operand.hbm [shape: f32[8,128], index: 3, kind: output, shape index: {}]
  %s4 = sld [smem:[#allocation0]]
  $region30: #{tpu_custom_call.1} parent=0
    _
  %s6 = ssub.s32 1, %s4
  %s7 = scalar_select 0, %s6, %s4
  $region1: #{tpu_custom_call.1} parent=0
    #allocation2 [shape = 'u8[4096]{0}', space=vmem, size = 0x1000, scoped, tag = 'input window, operand 0, single buffered']
    #allocation3 [shape = 's32[1]{0}', space=sflag, size = 0x4, scoped, tag = 'scoped memory for tpu_custom_call.1']
    #allocation4 [shape = 's32[1]{0}', space=sflag, size = 0x4, scoped, tag = 'scoped memory for tpu_custom_call.1']
    #allocation5 [shape = 'u8[32768]{0}', space=vmem, size = 0x8000, scoped, tag = 'input window, operand 1, single buffered']
    #allocation6 [shape = 's32[1]{0}', space=sflag, size = 0x4, scoped, tag = 'scoped memory for tpu_custom_call.1']
    #allocation7 [shape = 'u8[4096]{0}', space=vmem, size = 0x1000, scoped, tag = 'output window, operand 0, single buffered']
    %8 = vsyncpa [#allocation3], 0
    %9 = vsyncpa [#allocation6], 0
    %10 = vsyncpa [#allocation4], 0
    // Predicated region
    $region2: #{tpu_custom_call.1} parent=1 // pred_check
      _
    $region3: #{tpu_custom_call.1} parent=1 // pred_check_branch
      %12 = sbr.rel (0) target = $region5
    $region4: #{tpu_custom_call.1} parent=1 // pred_region
      %s14 = ssub.s32 128, 128
      %15 = vsyncadd [#allocation3], %s14
      %s17 = sshll.u32 [#allocation2], 4
      %s18 = int_to_ptr.vmem [resolvable:$true] %s17
      %20 = dma.hbm_to_vmem [thread:$0]  %s0, 128, %s18, [#allocation3]
    $region5: #{tpu_custom_call.1} parent=1 // pred_fallthru
      _
    // Predicated region
    $region6: #{tpu_custom_call.1} parent=1 // pred_check
      _
    $region7: #{tpu_custom_call.1} parent=1 // pred_check_branch
      %22 = sbr.rel (0) target = $region9
    $region8: #{tpu_custom_call.1} parent=1 // pred_region
      %s24 = ssub.s32 1024, 1024
      %25 = vsyncadd [#allocation6], %s24
      %s26 = sshll.u32 [#allocation5], 4
      %s27 = int_to_ptr.vmem [resolvable:$true] %s26
      %32 = dma.hbm_to_vmem [thread:$0]  %s1, 1024, %s27, [#allocation6], 64, 64, 4
    $region9: #{tpu_custom_call.1} parent=1 // pred_fallthru
      _
    // Predicated region
    $region10: #{tpu_custom_call.1} parent=1 // pred_check
      _
    $region11: #{tpu_custom_call.1} parent=1 // pred_check_branch
      %34 = sbr.rel (0) target = $region13
    $region12: #{tpu_custom_call.1} parent=1 // pred_region
      _
    $region13: #{tpu_custom_call.1} parent=1 // pred_fallthru
      _
    // Predicated region
    $region14: #{tpu_custom_call.1} parent=1 // pred_check
      _
    $region15: #{tpu_custom_call.1} parent=1 // pred_check_branch
      %36 = sbr.rel (0) target = $region17
    $region16: #{tpu_custom_call.1} parent=1 // pred_region
      %37 = dma.done [#allocation3], 128
    $region17: #{tpu_custom_call.1} parent=1 // pred_fallthru
      _
    // Predicated region
    $region18: #{tpu_custom_call.1} parent=1 // pred_check
      _
    $region19: #{tpu_custom_call.1} parent=1 // pred_check_branch
      %39 = sbr.rel (0) target = $region21
    $region20: #{tpu_custom_call.1} parent=1 // pred_region
      %40 = dma.done [#allocation6], 1024
    $region21: #{tpu_custom_call.1} parent=1 // pred_fallthru
      _
    %v42 = vld [vmem:[#allocation2] sm:$0xff]
    %v43 = vpack.c.bf16 %v42, %v42
    %v44 = vld [vmem:[#allocation5] sm:$0xf]
    %v45 = vld [vmem:[#allocation5 + $0x4] sm:$0xf]
    %v46 = vld [vmem:[#allocation5 + $0x8] sm:$0xf]
    %v47 = vld [vmem:[#allocation5 + $0xc] sm:$0xf]
    %v48 = vld [vmem:[#allocation5 + $0x10] sm:$0xf]
    %v49 = vld [vmem:[#allocation5 + $0x14] sm:$0xf]
    %v50 = vld [vmem:[#allocation5 + $0x18] sm:$0xf]
    %v51 = vld [vmem:[#allocation5 + $0x1c] sm:$0xf]
    %v52 = vld [vmem:[#allocation5 + $0x20] sm:$0xf]
    %v53 = vld [vmem:[#allocation5 + $0x24] sm:$0xf]
    %v54 = vld [vmem:[#allocation5 + $0x28] sm:$0xf]
    %v55 = vld [vmem:[#allocation5 + $0x2c] sm:$0xf]
    %v56 = vld [vmem:[#allocation5 + $0x30] sm:$0xf]
    %v57 = vld [vmem:[#allocation5 + $0x34] sm:$0xf]
    %v58 = vld [vmem:[#allocation5 + $0x38] sm:$0xf]
    %v59 = vld [vmem:[#allocation5 + $0x3c] sm:$0xf]
    %v60 = vld [vmem:[%s2] sm:$0x1]
    %v62 = vlaneseq
    %v63 = vshrl.u32 %v62, 7
    %v64 = vsub.s32 0, %v63
    %v65 = vrot.slane %v60, %v64
    %v83 = vunpack.c.l.b16 %v44
    %v84 = vunpack.c.l.b16 %v45
    %v85 = vunpack.c.l.b16 %v46
    %v86 = vunpack.c.l.b16 %v47
    %v87 = vunpack.c.l.b16 %v48
    %v88 = vunpack.c.l.b16 %v49
    %v89 = vunpack.c.l.b16 %v50
    %v90 = vunpack.c.l.b16 %v51
    %v91 = vunpack.c.l.b16 %v52
    %v92 = vunpack.c.l.b16 %v53
    %v93 = vunpack.c.l.b16 %v54
    %v94 = vunpack.c.l.b16 %v55
    %v95 = vunpack.c.l.b16 %v56
    %v96 = vunpack.c.l.b16 %v57
    %v97 = vunpack.c.l.b16 %v58
    %v98 = vunpack.c.l.b16 %v59
    %v99 = vpack.c.b16 %v84, %v83
    %v100 = vpack.c.b16 %v86, %v85
    %v101 = vpack.c.b16 %v88, %v87
    %v102 = vpack.c.b16 %v90, %v89
    %v103 = vpack.c.b16 %v92, %v91
    %v104 = vpack.c.b16 %v94, %v93
    %v105 = vpack.c.b16 %v96, %v95
    %v106 = vpack.c.b16 %v98, %v97
    %115 = vmatprep.subr.bf16.mxu0 0
    %116 = vmatpush1.bf16.msra.mxu0 %v99
    %117 = vmatprep.subr.bf16.mxu0 0
    %118 = vmatpush1.bf16.msra.mxu0 %v100
    %119 = vmatprep.subr.bf16.mxu0 0
    %120 = vmatpush1.bf16.msra.mxu0 %v101
    %121 = vmatprep.subr.bf16.mxu0 0
    %122 = vmatpush1.bf16.msra.mxu0 %v102
    %123 = vmatprep.subr.bf16.mxu0 0
    %124 = vmatpush1.bf16.msra.mxu0 %v103
    %125 = vmatprep.subr.bf16.mxu0 0
    %126 = vmatpush1.bf16.msra.mxu0 %v104
    %127 = vmatprep.subr.bf16.mxu0 0
    %128 = vmatpush1.bf16.msra.mxu0 %v105
    %129 = vmatprep.subr.bf16.mxu0 0
    %130 = vmatpush1.bf16.msra.mxu0 %v106
    %131 = vmatprep.subr.bf16.mxu0 0
    %132 = vmatpush1.bf16.msra.mxu0 0
    %133 = vmatprep.subr.bf16.mxu0 0
    %134 = vmatpush1.bf16.msra.mxu0 0
    %135 = vmatprep.subr.bf16.mxu0 0
    %136 = vmatpush1.bf16.msra.mxu0 0
    %137 = vmatprep.subr.bf16.mxu0 0
    %138 = vmatpush1.bf16.msra.mxu0 0
    %139 = vmatprep.subr.bf16.mxu0 0
    %140 = vmatpush1.bf16.msra.mxu0 0
    %141 = vmatprep.subr.bf16.mxu0 0
    %142 = vmatpush1.bf16.msra.mxu0 0
    %143 = vmatprep.subr.bf16.mxu0 0
    %144 = vmatpush1.bf16.msra.mxu0 0
    %145 = vmatprep.subr.bf16.mxu0 0
    %146 = vmatpush1.bf16.msra.mxu0 0
    %147 = vmatprep.mubr.bf16.mxu0 0
    %148 = vmatmul.mubr.bf16.gmra.mrb[0].mxu0 %v43
    %v149 = vpop.f32.mrb[0].mxu0
    %v150 = vadd.f32 %v65, %v149
    %v151 = vpop.f32.mrb[0].mxu0
    %v152 = vpop.f32.mrb[0].mxu0
    %v153 = vpop.f32.mrb[0].mxu0
    %154 = vdwg.mxu0
    %v155 = vadd.f32 %v150, %v42
    %v156 = vtanh.pop %v155
    %157 = vst [vmem:[#allocation7] sm:$0xff] %v156
    // Predicated region
    $region22: #{tpu_custom_call.1} parent=1 // pred_check
      _
    $region23: #{tpu_custom_call.1} parent=1 // pred_check_branch
      %159 = sbr.rel (0) target = $region25
    $region24: #{tpu_custom_call.1} parent=1 // pred_region
      %s161 = ssub.s32 128, 128
      %162 = vsyncadd [#allocation4], %s161
      %s164 = sshll.u32 [#allocation7], 4
      %s165 = int_to_ptr.vmem [resolvable:$true] %s164
      %167 = dma.vmem_to_hbm [thread:$0]  %s165, 128, %s3, [#allocation4]
    $region25: #{tpu_custom_call.1} parent=1 // pred_fallthru
      _
    // Predicated region
    $region26: #{tpu_custom_call.1} parent=1 // pred_check
      _
    $region27: #{tpu_custom_call.1} parent=1 // pred_check_branch
      %169 = sbr.rel (0) target = $region29
    $region28: #{tpu_custom_call.1} parent=1 // pred_region
      %170 = dma.done [#allocation4], 128
    $region29: #{tpu_custom_call.1} parent=1 // pred_fallthru
      _
    %171 = vsyncpa [#allocation3], 1
    %172 = vsyncpa [#allocation6], 1
    %173 = vsyncpa [#allocation4], 1

</llo_original>
